<compile_context>
chip_gen: v7x
topology: tpu7x:2x2x1
jax: 0.10.0
libtpu: 0.0.40
codegen_flags: <defaults>
</compile_context>

<pallas_src>
import jax
import jax.numpy as jnp
from jax.experimental import pallas as pl
from jax.experimental.pallas import tpu as pltpu


def luong_gen_attention_kernel(e_ref, h_ref, g_ref, u_ref, bb_ref,
                               scores_ref, ctx_ref,
                               v_scr, c_scr, m_scr, l_scr, acc_scr):
    # e_ref      : (TB, TS, M)  encoder-state chunk for this (batch, seq) tile
    # h_ref      : (TB, M)      hidden states for this batch tile
    # g_ref      : (M, M)       G = W^T W
    # u_ref      : (1, M)       u = W^T bias (row)
    # bb_ref     : (1, 1) SMEM  bias . bias
    # scores_ref : (TB, TS)     pre-softmax scores chunk (lane-dense over S)
    # ctx_ref    : (TB, M)      context (lane-dense over M), written on last chunk
    # v_scr      : (TB, M) f32  v[b] = h[b] @ G + u        (per batch tile)
    # c_scr      : (TB, 1) f32  c[b] = h[b] . u + bias.bias
    # m_scr/l_scr: (TB, 1) f32  online-softmax running max / sum
    # acc_scr    : (TB, M) f32  online-softmax context accumulator
    s_idx = pl.program_id(1)

    @pl.when(s_idx == 0)
    def _():
        h = h_ref[...].astype(jnp.float32)                               # (TB, M)
        u = u_ref[...]                                                   # (1, M)
        v_scr[...] = jnp.dot(h, g_ref[...],
                             preferred_element_type=jnp.float32) + u     # (TB, M)
        c_scr[...] = jnp.sum(h * u, axis=-1, keepdims=True) + bb_ref[0, 0]
        m_scr[...] = jnp.full_like(m_scr, -jnp.inf)
        l_scr[...] = jnp.zeros_like(l_scr)
        acc_scr[...] = jnp.zeros_like(acc_scr)

    e = e_ref[...]                                                       # (TB, TS, M)

    # scores[b, s] = e[b, s] . v[b] + c[b]
    # MXU matmul in e's natural orientation: (TS, M) @ (M, 1) per batch row.
    v_col = v_scr[...][:, :, None].astype(e.dtype)                       # (TB, M, 1)
    sc = jnp.einsum("bsm,bmk->bsk", e, v_col,
                    preferred_element_type=jnp.float32)                  # (TB, TS, 1)
    scores = sc[:, :, 0] + c_scr[...]                                    # (TB, TS)
    scores_ref[...] = scores.astype(scores_ref.dtype)

    # Online softmax update over the sequence chunks.
    m_prev = m_scr[...]                                                  # (TB, 1)
    m_new = jnp.maximum(m_prev, jnp.max(scores, axis=-1, keepdims=True))
    alpha = jnp.exp(m_prev - m_new)                                      # (TB, 1)
    p = jnp.exp(scores - m_new)                                          # (TB, TS)
    l_scr[...] = alpha * l_scr[...] + jnp.sum(p, axis=-1, keepdims=True)

    # context chunk: (1, TS) @ (TS, M) per batch row — e again in natural layout.
    p_row = p[:, None, :].astype(e.dtype)                                # (TB, 1, TS)
    ctx_chunk = jnp.einsum("bks,bsm->bkm", p_row, e,
                           preferred_element_type=jnp.float32)[:, 0, :]  # (TB, M)
    acc_scr[...] = alpha * acc_scr[...] + ctx_chunk
    m_scr[...] = m_new

    @pl.when(s_idx == pl.num_programs(1) - 1)
    def _():
        l = l_scr[...]
        inv_l = pl.reciprocal(l, approx=True)      # EUP slot
        inv_l = inv_l * (2.0 - l * inv_l)          # one Newton step -> f32 accuracy
        ctx_ref[...] = (acc_scr[...] * inv_l).astype(ctx_ref.dtype)


def _vmem_budget():
    """Explicit VMEM limit + usable budget, derived from the chip's capacity."""
    try:
        phys = pltpu.get_tpu_info().vmem_capacity_bytes
    except Exception:
        phys = 64 * 1024 * 1024           # conservative (v7x per-TensorCore)
    limit = min((phys * 3) // 4, 100 * 1024 * 1024)   # leave compiler headroom
    return limit, int(limit * 0.7)


def _choose_tiles(B, S, M, e_itemsize, vmem_budget):
    """VMEM-budget-aware (batch, seq) tile selection.

    Constraints honored:
      * batch tile tb: == B, or a multiple of 8 dividing B (sublane-dense outputs)
      * seq tile ts  : == S, or a multiple of 128 dividing S (lane-dense scores)
      * >= 2 batch grid steps when B >= 16 (both v7x TensorCores pull from HBM)
      * per-step e DMA kept near the amortization knee rather than maximized
    """
    def usage(tb, ts):
        e_blk = 2 * tb * ts * M * e_itemsize          # double-buffered e tile
        h_blk = 2 * tb * M * 4
        outs = 2 * tb * ts * 4 + 2 * tb * M * 4
        scratch = 2 * tb * M * 4 + 4 * tb * 4
        weights = (M * M + 2 * M) * 4                 # G, u (+ slack)
        return e_blk + h_blk + outs + scratch + weights

    if B <= 8:
        tb_cands = [B]
    else:
        tb_cands = [d for d in range(8, B + 1, 8) if B % d == 0] or [B]
        if B >= 16:
            capped = [d for d in tb_cands if d <= B // 2]
            if capped:
                tb_cands = capped
    tb_min = min(tb_cands)

    ts_cands = [S] + [c for c in range(128, S, 128) if S % c == 0]
    fitting_ts = [c for c in ts_cands if usage(tb_min, c) <= vmem_budget]
    ts = max(fitting_ts) if fitting_ts else min(ts_cands)

    knee = 4 * 1024 * 1024                            # per-step e DMA (single buffer)
    good = [d for d in tb_cands
            if usage(d, ts) <= vmem_budget and d * ts * M * e_itemsize <= knee]
    if not good:
        good = [d for d in tb_cands if usage(d, ts) <= vmem_budget] or [tb_min]
    return max(good), ts


def luong_gen_attention(encode_state, hid_state, weight, bias):
    """encode_state: (B,S,M); hid_state: (B,M); weight: (A,M); bias: (A,)."""
    B, S, M = encode_state.shape
    out_dtype = encode_state.dtype

    # Fold the Linear entirely into (M,M)/(M,)/scalar quantities (A disappears).
    w32 = weight.astype(jnp.float32)
    b32 = bias.astype(jnp.float32)
    G = w32.T @ w32                              # (M, M)
    u = (b32 @ w32).reshape(1, M)                # (1, M)  == W^T bias as a row
    bb = jnp.sum(b32 * b32).reshape(1, 1)        # (1, 1)  == bias . bias

    vmem_limit, vmem_budget = _vmem_budget()
    e_itemsize = jnp.dtype(encode_state.dtype).itemsize
    tb, ts = _choose_tiles(B, S, M, e_itemsize, vmem_budget)
    assert B % tb == 0 and S % ts == 0

    scores, context = pl.pallas_call(
        luong_gen_attention_kernel,
        out_shape=(
            jax.ShapeDtypeStruct((B, S), out_dtype),
            jax.ShapeDtypeStruct((B, M), out_dtype),
        ),
        grid=(B // tb, S // ts),
        in_specs=[
            pl.BlockSpec((tb, ts, M), lambda b, s: (b, s, 0)),   # encode_state
            pl.BlockSpec((tb, M), lambda b, s: (b, 0)),          # hid_state
            pl.BlockSpec((M, M), lambda b, s: (0, 0)),           # G
            pl.BlockSpec((1, M), lambda b, s: (0, 0)),           # u
            pl.BlockSpec(memory_space=pltpu.MemorySpace.SMEM),   # bias.bias scalar
        ],
        out_specs=(
            pl.BlockSpec((tb, ts), lambda b, s: (b, s)),         # scores
            pl.BlockSpec((tb, M), lambda b, s: (b, 0)),          # context (resident)
        ),
        scratch_shapes=[
            pltpu.VMEM((tb, M), jnp.float32),    # v_scr
            pltpu.VMEM((tb, 1), jnp.float32),    # c_scr
            pltpu.VMEM((tb, 1), jnp.float32),    # m_scr
            pltpu.VMEM((tb, 1), jnp.float32),    # l_scr
            pltpu.VMEM((tb, M), jnp.float32),    # acc_scr
        ],
        compiler_params=pltpu.CompilerParams(
            dimension_semantics=("parallel", "arbitrary"),
            vmem_limit_bytes=vmem_limit,
        ),
    )(encode_state, hid_state, G, u, bb)

    return scores, context


def ref_forward(encode_state, hid_state, weight, bias):
    """Pure-JAX reference matching the PyTorch module."""
    eW = encode_state @ weight.T + bias          # (B, S, A)
    hW = hid_state @ weight.T + bias             # (B, A)
    scores = jnp.einsum("bsa,ba->bs", eW, hW)    # (B, S)
    probs = jax.nn.softmax(scores, axis=1)
    context = jnp.sum(probs[..., None] * encode_state, axis=1)
    return scores, context


if __name__ == "__main__":
    B, S = 2, 8
    model_size, atten_size = 32, 16

    key = jax.random.PRNGKey(0)
    k1, k2, k3, k4 = jax.random.split(key, 4)

    encode_state = jax.random.normal(k1, (B, S, model_size), dtype=jnp.float32)
    hid_state = jax.random.normal(k2, (B, model_size), dtype=jnp.float32)
    # Deterministic "Linear(model_size, atten_size)" params: weight (A, M), bias (A,)
    weight = jax.random.normal(k3, (atten_size, model_size), dtype=jnp.float32) * 0.1
    bias = jax.random.normal(k4, (atten_size,), dtype=jnp.float32) * 0.1

    scores, context = luong_gen_attention(encode_state, hid_state, weight, bias)
    jax.block_until_ready((scores, context))

    scores_ref, context_ref = ref_forward(encode_state, hid_state, weight, bias)
    assert scores.shape == (B, S) and context.shape == (B, model_size)
    assert jnp.allclose(scores, scores_ref, atol=1e-4, rtol=1e-4)
    assert jnp.allclose(context, context_ref, atol=1e-4, rtol=1e-4)

    print("KERNEL_OK")
</pallas_src>

<mosaic_0001>
module attributes {stable_mosaic.version = 11 : i64} {
  func.func @luong_gen_attention_kernel(%arg0: i32, %arg1: i32, %arg2: memref<2x8x32xf32, #tpu.memory_space<vmem>>, %arg3: memref<2x32xf32, #tpu.memory_space<vmem>>, %arg4: memref<32x32xf32, #tpu.memory_space<vmem>>, %arg5: memref<1x32xf32, #tpu.memory_space<vmem>>, %arg6: memref<1x1xf32, #tpu.memory_space<smem>>, %arg7: memref<2x8xf32, #tpu.memory_space<vmem>>, %arg8: memref<2x32xf32, #tpu.memory_space<vmem>>, %arg9: memref<2x32xf32, #tpu.memory_space<vmem>>, %arg10: memref<2x1xf32, #tpu.memory_space<vmem>>, %arg11: memref<2x1xf32, #tpu.memory_space<vmem>>, %arg12: memref<2x1xf32, #tpu.memory_space<vmem>>, %arg13: memref<2x32xf32, #tpu.memory_space<vmem>>) attributes {dimension_semantics = [#tpu.dimension_semantics<parallel>, #tpu.dimension_semantics<arbitrary>], iteration_bounds = array<i64: 1, 1>, scalar_prefetch = 0 : i64, scratch_operands = 5 : i64, tpu.core_type = #tpu.core_type<tc>, window_params = [{transform_indices = @transform_0, window_bounds = array<i64: 2, 8, 32>}, {transform_indices = @transform_1, window_bounds = array<i64: 2, 32>}, {pipeline_mode = #tpu.pipeline_mode<synchronous>, transform_indices = @transform_2, window_bounds = array<i64: 32, 32>}, {pipeline_mode = #tpu.pipeline_mode<synchronous>, transform_indices = @transform_3, window_bounds = array<i64: 1, 32>}, {transform_indices = @transform_4, window_bounds = array<i64: 1, 1>}, {transform_indices = @transform_5, window_bounds = array<i64: 2, 8>}, {transform_indices = @transform_6, window_bounds = array<i64: 2, 32>}]} {
    %c0_i32 = arith.constant 0 : i32
    %0 = arith.cmpi eq, %arg1, %c0_i32 : i32
    %1 = arith.extui %0 : i1 to i32
    %c0_i32_0 = arith.constant 0 : i32
    %2 = arith.cmpi ne, %1, %c0_i32_0 : i32
    scf.if %2 {
      %c0_26 = arith.constant 0 : index
      %c0_27 = arith.constant 0 : index
      %39 = vector.load %arg3[%c0_26, %c0_27] : memref<2x32xf32, #tpu.memory_space<vmem>>, vector<2x32xf32>
      %c0_28 = arith.constant 0 : index
      %c0_29 = arith.constant 0 : index
      %40 = vector.load %arg5[%c0_28, %c0_29] : memref<1x32xf32, #tpu.memory_space<vmem>>, vector<1x32xf32>
      %c0_30 = arith.constant 0 : index
      %c0_31 = arith.constant 0 : index
      %41 = vector.load %arg4[%c0_30, %c0_31] : memref<32x32xf32, #tpu.memory_space<vmem>>, vector<32x32xf32>
      %cst_32 = arith.constant dense<0.000000e+00> : vector<2x32xf32>
      %42 = tpu.matmul %39, %41, %cst_32 {dimension_numbers = #tpu.dot_dimension_numbers<[1], [0], [0], [1], [0, 0, 1, 1], [], []>} : vector<2x32xf32>, vector<32x32xf32>, vector<2x32xf32> -> vector<2x32xf32>
      %43 = vector.broadcast %40 : vector<1x32xf32> to vector<2x32xf32>
      %44 = arith.addf %42, %43 : vector<2x32xf32>
      %c0_33 = arith.constant 0 : index
      %c0_34 = arith.constant 0 : index
      %45 = vector.load %arg9[%c0_33, %c0_34] : memref<2x32xf32, #tpu.memory_space<vmem>>, vector<2x32xf32>
      tpu.vector_store %arg9[%c0_33, %c0_34], %44 {strides = array<i32>} : memref<2x32xf32, #tpu.memory_space<vmem>>, vector<2x32xf32>,
      %46 = vector.broadcast %40 : vector<1x32xf32> to vector<2x32xf32>
      %47 = arith.mulf %39, %46 : vector<2x32xf32>
      %cst_35 = arith.constant dense<0.000000e+00> : vector<2xf32>
      %48 = vector.multi_reduction <add>, %47, %cst_35 [1] : vector<2x32xf32> to vector<2xf32>
      %49 = vector.shape_cast %48 : vector<2xf32> to vector<2x1xf32>
      %c0_36 = arith.constant 0 : index
      %c0_37 = arith.constant 0 : index
      %50 = memref.load %arg6[%c0_36, %c0_37] : memref<1x1xf32, #tpu.memory_space<smem>>
      %51 = vector.broadcast %50 : f32 to vector<2x1xf32>
      %52 = arith.addf %49, %51 : vector<2x1xf32>
      %c0_38 = arith.constant 0 : index
      %c0_39 = arith.constant 0 : index
      %53 = vector.load %arg10[%c0_38, %c0_39] : memref<2x1xf32, #tpu.memory_space<vmem>>, vector<2x1xf32>
      tpu.vector_store %arg10[%c0_38, %c0_39], %52 {strides = array<i32>} : memref<2x1xf32, #tpu.memory_space<vmem>>, vector<2x1xf32>,
      %cst_40 = arith.constant 0xFF800000 : f32
      %54 = vector.broadcast %cst_40 : f32 to vector<2x1xf32>
      %c0_41 = arith.constant 0 : index
      %c0_42 = arith.constant 0 : index
      %55 = vector.load %arg11[%c0_41, %c0_42] : memref<2x1xf32, #tpu.memory_space<vmem>>, vector<2x1xf32>
      tpu.vector_store %arg11[%c0_41, %c0_42], %54 {strides = array<i32>} : memref<2x1xf32, #tpu.memory_space<vmem>>, vector<2x1xf32>,
      %cst_43 = arith.constant 0.000000e+00 : f32
      %56 = vector.broadcast %cst_43 : f32 to vector<2x1xf32>
      %c0_44 = arith.constant 0 : index
      %c0_45 = arith.constant 0 : index
      %57 = vector.load %arg12[%c0_44, %c0_45] : memref<2x1xf32, #tpu.memory_space<vmem>>, vector<2x1xf32>
      tpu.vector_store %arg12[%c0_44, %c0_45], %56 {strides = array<i32>} : memref<2x1xf32, #tpu.memory_space<vmem>>, vector<2x1xf32>,
      %cst_46 = arith.constant 0.000000e+00 : f32
      %58 = vector.broadcast %cst_46 : f32 to vector<2x32xf32>
      %c0_47 = arith.constant 0 : index
      %c0_48 = arith.constant 0 : index
      %59 = vector.load %arg13[%c0_47, %c0_48] : memref<2x32xf32, #tpu.memory_space<vmem>>, vector<2x32xf32>
      tpu.vector_store %arg13[%c0_47, %c0_48], %58 {strides = array<i32>} : memref<2x32xf32, #tpu.memory_space<vmem>>, vector<2x32xf32>,
    } else {
    }
    %c0 = arith.constant 0 : index
    %c0_1 = arith.constant 0 : index
    %c0_2 = arith.constant 0 : index
    %3 = vector.load %arg2[%c0, %c0_1, %c0_2] : memref<2x8x32xf32, #tpu.memory_space<vmem>>, vector<2x8x32xf32>
    %c0_3 = arith.constant 0 : index
    %c0_4 = arith.constant 0 : index
    %4 = vector.load %arg9[%c0_3, %c0_4] : memref<2x32xf32, #tpu.memory_space<vmem>>, vector<2x32xf32>
    %5 = vector.shape_cast %4 : vector<2x32xf32> to vector<2x32x1xf32>
    "tpu.trace_start"() <{level = 10 : i32, message = "bsm,bmk->bsk"}> : () -> ()
    %cst = arith.constant dense<0.000000e+00> : vector<2x8x1xf32>
    %6 = tpu.matmul %3, %5, %cst {dimension_numbers = #tpu.dot_dimension_numbers<[2], [1], [1], [2], [0, 0, 0, 1, 1, 2], [0], [0]>} : vector<2x8x32xf32>, vector<2x32x1xf32>, vector<2x8x1xf32> -> vector<2x8x1xf32>
    "tpu.trace_stop"() : () -> ()
    %7 = vector.shape_cast %6 : vector<2x8x1xf32> to vector<2x8xf32>
    %c0_5 = arith.constant 0 : index
    %c0_6 = arith.constant 0 : index
    %8 = vector.load %arg10[%c0_5, %c0_6] : memref<2x1xf32, #tpu.memory_space<vmem>>, vector<2x1xf32>
    %9 = vector.broadcast %8 : vector<2x1xf32> to vector<2x8xf32>
    %10 = arith.addf %7, %9 : vector<2x8xf32>
    %c0_7 = arith.constant 0 : index
    %c0_8 = arith.constant 0 : index
    %11 = vector.load %arg7[%c0_7, %c0_8] : memref<2x8xf32, #tpu.memory_space<vmem>>, vector<2x8xf32>
    tpu.vector_store %arg7[%c0_7, %c0_8], %10 {strides = array<i32>} : memref<2x8xf32, #tpu.memory_space<vmem>>, vector<2x8xf32>,
    %c0_9 = arith.constant 0 : index
    %c0_10 = arith.constant 0 : index
    %12 = vector.load %arg11[%c0_9, %c0_10] : memref<2x1xf32, #tpu.memory_space<vmem>>, vector<2x1xf32>
    %cst_11 = arith.constant dense<0xFF800000> : vector<2xf32>
    %13 = vector.multi_reduction <maximumf>, %10, %cst_11 [1] : vector<2x8xf32> to vector<2xf32>
    %14 = vector.shape_cast %13 : vector<2xf32> to vector<2x1xf32>
    %15 = arith.maximumf %12, %14 : vector<2x1xf32>
    %16 = arith.subf %12, %15 : vector<2x1xf32>
    %17 = math.exp %16 : vector<2x1xf32>
    %18 = vector.broadcast %15 : vector<2x1xf32> to vector<2x8xf32>
    %19 = arith.subf %10, %18 : vector<2x8xf32>
    %20 = math.exp %19 : vector<2x8xf32>
    %c0_12 = arith.constant 0 : index
    %c0_13 = arith.constant 0 : index
    %21 = vector.load %arg12[%c0_12, %c0_13] : memref<2x1xf32, #tpu.memory_space<vmem>>, vector<2x1xf32>
    %22 = arith.mulf %17, %21 : vector<2x1xf32>
    %cst_14 = arith.constant dense<0.000000e+00> : vector<2xf32>
    %23 = vector.multi_reduction <add>, %20, %cst_14 [1] : vector<2x8xf32> to vector<2xf32>
    %24 = vector.shape_cast %23 : vector<2xf32> to vector<2x1xf32>
    %25 = arith.addf %22, %24 : vector<2x1xf32>
    %c0_15 = arith.constant 0 : index
    %c0_16 = arith.constant 0 : index
    %26 = vector.load %arg12[%c0_15, %c0_16] : memref<2x1xf32, #tpu.memory_space<vmem>>, vector<2x1xf32>
    tpu.vector_store %arg12[%c0_15, %c0_16], %25 {strides = array<i32>} : memref<2x1xf32, #tpu.memory_space<vmem>>, vector<2x1xf32>,
    %27 = vector.shape_cast %20 : vector<2x8xf32> to vector<2x1x8xf32>
    "tpu.trace_start"() <{level = 10 : i32, message = "bks,bsm->bkm"}> : () -> ()
    %cst_17 = arith.constant dense<0.000000e+00> : vector<2x1x32xf32>
    %28 = tpu.matmul %27, %3, %cst_17 {dimension_numbers = #tpu.dot_dimension_numbers<[2], [1], [1], [2], [0, 0, 0, 1, 1, 2], [0], [0]>} : vector<2x1x8xf32>, vector<2x8x32xf32>, vector<2x1x32xf32> -> vector<2x1x32xf32>
    "tpu.trace_stop"() : () -> ()
    %29 = vector.shape_cast %28 : vector<2x1x32xf32> to vector<2x32xf32>
    %c0_18 = arith.constant 0 : index
    %c0_19 = arith.constant 0 : index
    %30 = vector.load %arg13[%c0_18, %c0_19] : memref<2x32xf32, #tpu.memory_space<vmem>>, vector<2x32xf32>
    %31 = vector.broadcast %17 : vector<2x1xf32> to vector<2x32xf32>
    %32 = arith.mulf %31, %30 : vector<2x32xf32>
    %33 = arith.addf %32, %29 : vector<2x32xf32>
    %c0_20 = arith.constant 0 : index
    %c0_21 = arith.constant 0 : index
    %34 = vector.load %arg13[%c0_20, %c0_21] : memref<2x32xf32, #tpu.memory_space<vmem>>, vector<2x32xf32>
    tpu.vector_store %arg13[%c0_20, %c0_21], %33 {strides = array<i32>} : memref<2x32xf32, #tpu.memory_space<vmem>>, vector<2x32xf32>,
    %c0_22 = arith.constant 0 : index
    %c0_23 = arith.constant 0 : index
    %35 = vector.load %arg11[%c0_22, %c0_23] : memref<2x1xf32, #tpu.memory_space<vmem>>, vector<2x1xf32>
    tpu.vector_store %arg11[%c0_22, %c0_23], %15 {strides = array<i32>} : memref<2x1xf32, #tpu.memory_space<vmem>>, vector<2x1xf32>,
    %c0_i32_24 = arith.constant 0 : i32
    %36 = arith.cmpi eq, %arg1, %c0_i32_24 : i32
    %37 = arith.extui %36 : i1 to i32
    %c0_i32_25 = arith.constant 0 : i32
    %38 = arith.cmpi ne, %37, %c0_i32_25 : i32
    scf.if %38 {
      %c0_26 = arith.constant 0 : index
      %c0_27 = arith.constant 0 : index
      %39 = vector.load %arg12[%c0_26, %c0_27] : memref<2x1xf32, #tpu.memory_space<vmem>>, vector<2x1xf32>
      %40 = tpu.reciprocal %39 {approx = true} : vector<2x1xf32> -> vector<2x1xf32>
      %41 = arith.mulf %39, %40 : vector<2x1xf32>
      %cst_28 = arith.constant 2.000000e+00 : f32
      %42 = vector.broadcast %cst_28 : f32 to vector<2x1xf32>
      %43 = arith.subf %42, %41 : vector<2x1xf32>
      %44 = arith.mulf %40, %43 : vector<2x1xf32>
      %c0_29 = arith.constant 0 : index
      %c0_30 = arith.constant 0 : index
      %45 = vector.load %arg13[%c0_29, %c0_30] : memref<2x32xf32, #tpu.memory_space<vmem>>, vector<2x32xf32>
      %46 = vector.broadcast %44 : vector<2x1xf32> to vector<2x32xf32>
      %47 = arith.mulf %45, %46 : vector<2x32xf32>
      %c0_31 = arith.constant 0 : index
      %c0_32 = arith.constant 0 : index
      %48 = vector.load %arg8[%c0_31, %c0_32] : memref<2x32xf32, #tpu.memory_space<vmem>>, vector<2x32xf32>
      tpu.vector_store %arg8[%c0_31, %c0_32], %47 {strides = array<i32>} : memref<2x32xf32, #tpu.memory_space<vmem>>, vector<2x32xf32>,
    } else {
    }
    return
  }
  func.func @transform_0(%arg0: i32, %arg1: i32) -> (i32, i32, i32) {
    %c0_i32 = arith.constant 0 : i32
    %c0_i32_0 = arith.constant 0 : i32
    return %arg0, %arg1, %c0_i32 : i32, i32, i32
  }
  func.func @transform_1(%arg0: i32, %arg1: i32) -> (i32, i32) {
    %c0_i32 = arith.constant 0 : i32
    %c0_i32_0 = arith.constant 0 : i32
    return %arg0, %c0_i32 : i32, i32
  }
  func.func @transform_2(%arg0: i32, %arg1: i32) -> (i32, i32) {
    %c0_i32 = arith.constant 0 : i32
    %c0_i32_0 = arith.constant 0 : i32
    %c0_i32_1 = arith.constant 0 : i32
    return %c0_i32, %c0_i32_0 : i32, i32
  }
  func.func @transform_3(%arg0: i32, %arg1: i32) -> (i32, i32) {
    %c0_i32 = arith.constant 0 : i32
    %c0_i32_0 = arith.constant 0 : i32
    %c0_i32_1 = arith.constant 0 : i32
    return %c0_i32, %c0_i32_0 : i32, i32
  }
  func.func @transform_4(%arg0: i32, %arg1: i32) -> (i32, i32) {
    %c0_i32 = arith.constant 0 : i32
    %c0_i32_0 = arith.constant 0 : i32
    %c0_i32_1 = arith.constant 0 : i32
    return %c0_i32, %c0_i32_0 : i32, i32
  }
  func.func @transform_5(%arg0: i32, %arg1: i32) -> (i32, i32) {
    %c0_i32 = arith.constant 0 : i32
    return %arg0, %arg1 : i32, i32
  }
  func.func @transform_6(%arg0: i32, %arg1: i32) -> (i32, i32) {
    %c0_i32 = arith.constant 0 : i32
    %c0_i32_0 = arith.constant 0 : i32
    return %arg0, %c0_i32 : i32, i32
  }
}

</mosaic_0001>

<llo_original>
// kernel: tpu_custom_call.1
$region0: #{tpu_custom_call.1}
  #allocation0 [shape = 'u32[]', space=smem, size = 0x4, offset = 0x4, fixed_abs, tag = 'smem constant byte address 0x4 - core index']
  #allocation1 [shape = 'u32[144,128]{1,0:T(1,128)}', space=vmem, size = 0x12000, scoped, tag = 'internal scratch']
  #allocation2 [shape = 'f32[2,32]{1,0:T(2,128)}', space=vmem, size = 0x400, scoped, tag = 'scratch operand']
  #allocation3 [shape = 'f32[2,1]{1,0:T(2,128)}', space=vmem, size = 0x400, scoped, tag = 'scratch operand']
  #allocation4 [shape = 'f32[2,1]{1,0:T(2,128)}', space=vmem, size = 0x400, scoped, tag = 'scratch operand']
  #allocation5 [shape = 'f32[2,1]{1,0:T(2,128)}', space=vmem, size = 0x400, scoped, tag = 'scratch operand']
  #allocation6 [shape = 'f32[2,32]{1,0:T(2,128)}', space=vmem, size = 0x400, scoped, tag = 'scratch operand']
  #allocation7 [shape = 'f32[1,1]{1,0:T(1,128)S(6)}', space=smem, size = 0x200, scoped, tag = 'scoped memory for tpu_custom_call.1']
  %s0 = inlined_call_operand.hbm [shape: f32[2,8,32], index: 0, kind: input, shape index: {}]
  %s1 = inlined_call_operand.vmem [shape: f32[2,32], index: 1, kind: input, shape index: {}]
  %s2 = inlined_call_operand.hbm [shape: f32[32,32], index: 2, kind: input, shape index: {}]
  %s3 = inlined_call_operand.vmem [shape: f32[1,32], index: 3, kind: input, shape index: {}]
  %s4 = inlined_call_operand.<no memory space> [shape: f32[1,1], index: 4, kind: input, shape index: {}]
  %s5 = inlined_call_operand.hbm [shape: f32[2,8], index: 5, kind: output, shape index: {0}]
  %s6 = inlined_call_operand.hbm [shape: f32[2,32], index: 6, kind: output, shape index: {1}]
  %7 = xla_tuple %s5, %s6
  %s8 = sld [smem:[#allocation0]]
  $region54: #{tpu_custom_call.1} parent=0
    _
  %s10 = ssub.s32 1, %s8
  %s11 = scalar_select 0, %s10, %s8
  %12 = sst [smem:[#allocation7]] %s4
  $region1: #{tpu_custom_call.1} parent=0
    #allocation8 [shape = 'u8[8192]{0}', space=vmem, size = 0x2000, scoped, tag = 'input window, operand 0, single buffered']
    #allocation9 [shape = 's32[1]{0}', space=sflag, size = 0x4, scoped, tag = 'scoped memory for tpu_custom_call.1']
    #allocation10 [shape = 's32[1]{0}', space=sflag, size = 0x4, scoped, tag = 'scoped memory for tpu_custom_call.1']
    #allocation11 [shape = 'u8[16384]{0}', space=vmem, size = 0x4000, scoped, tag = 'input window, operand 2, single buffered']
    #allocation12 [shape = 's32[1]{0}', space=sflag, size = 0x4, scoped, tag = 'scoped memory for tpu_custom_call.1']
    #allocation13 [shape = 'u8[1024]{0}', space=vmem, size = 0x400, scoped, tag = 'output window, operand 0, single buffered']
    #allocation14 [shape = 'u8[1024]{0}', space=vmem, size = 0x400, scoped, tag = 'output window, operand 1, single buffered']
    #allocation15 [shape = 's32[1]{0}', space=sflag, size = 0x4, scoped, tag = 'scoped memory for tpu_custom_call.1']
    %13 = vsyncpa [#allocation9], 0
    %14 = vsyncpa [#allocation12], 0
    %15 = vsyncpa [#allocation10], 0
    %16 = vsyncpa [#allocation15], 0
    // Predicated region
    $region2: #{tpu_custom_call.1} parent=1 // pred_check
      _
    $region3: #{tpu_custom_call.1} parent=1 // pred_check_branch
      %18 = sbr.rel (0) target = $region5
    $region4: #{tpu_custom_call.1} parent=1 // pred_region
      %s20 = ssub.s32 256, 256
      %21 = vsyncadd [#allocation9], %s20
      %s22 = sshll.u32 [#allocation8], 4
      %s23 = int_to_ptr.vmem [resolvable:$true] %s22
      %28 = dma.hbm_to_vmem [thread:$0]  %s0, 256, %s23, [#allocation9], 128, 128, 8
    $region5: #{tpu_custom_call.1} parent=1 // pred_fallthru
      _
    // Predicated region
    $region6: #{tpu_custom_call.1} parent=1 // pred_check
      _
    $region7: #{tpu_custom_call.1} parent=1 // pred_check_branch
      %30 = sbr.rel (0) target = $region9
    $region8: #{tpu_custom_call.1} parent=1 // pred_region
      _
    $region9: #{tpu_custom_call.1} parent=1 // pred_fallthru
      _
    // Predicated region
    $region10: #{tpu_custom_call.1} parent=1 // pred_check
      _
    $region11: #{tpu_custom_call.1} parent=1 // pred_check_branch
      %32 = sbr.rel (0) target = $region13
    $region12: #{tpu_custom_call.1} parent=1 // pred_region
      %s34 = ssub.s32 512, 512
      %35 = vsyncadd [#allocation12], %s34
      %s36 = sshll.u32 [#allocation11], 4
      %s37 = int_to_ptr.vmem [resolvable:$true] %s36
      %42 = dma.hbm_to_vmem [thread:$0]  %s2, 512, %s37, [#allocation12], 128, 128, 8
    $region13: #{tpu_custom_call.1} parent=1 // pred_fallthru
      _
    // Predicated region
    $region14: #{tpu_custom_call.1} parent=1 // pred_check
      _
    $region15: #{tpu_custom_call.1} parent=1 // pred_check_branch
      %44 = sbr.rel (0) target = $region17
    $region16: #{tpu_custom_call.1} parent=1 // pred_region
      _
    $region17: #{tpu_custom_call.1} parent=1 // pred_fallthru
      _
    // Predicated region
    $region18: #{tpu_custom_call.1} parent=1 // pred_check
      _
    $region19: #{tpu_custom_call.1} parent=1 // pred_check_branch
      %46 = sbr.rel (0) target = $region21
    $region20: #{tpu_custom_call.1} parent=1 // pred_region
      _
    $region21: #{tpu_custom_call.1} parent=1 // pred_fallthru
      _
    // Predicated region
    $region22: #{tpu_custom_call.1} parent=1 // pred_check
      _
    $region23: #{tpu_custom_call.1} parent=1 // pred_check_branch
      %48 = sbr.rel (0) target = $region25
    $region24: #{tpu_custom_call.1} parent=1 // pred_region
      %49 = dma.done [#allocation9], 256
    $region25: #{tpu_custom_call.1} parent=1 // pred_fallthru
      _
    // Predicated region
    $region26: #{tpu_custom_call.1} parent=1 // pred_check
      _
    $region27: #{tpu_custom_call.1} parent=1 // pred_check_branch
      %51 = sbr.rel (0) target = $region29
    $region28: #{tpu_custom_call.1} parent=1 // pred_region
      %52 = dma.done [#allocation12], 512
    $region29: #{tpu_custom_call.1} parent=1 // pred_fallthru
      _
    %p53 = scmp.eq.s32.totalorder 0, 0
    // Predicated region
    $region30: #{tpu_custom_call.1} parent=1 // pred_check
      %p54 = pneg %p53
    $region31: #{tpu_custom_call.1} parent=1 // pred_check_branch
      %56 = sbr.rel (%p54) target = $region33
    $region32: #{tpu_custom_call.1} parent=1 // pred_region
      %v57 = vld [vmem:[%s1] sm:$0x3]
      %v58 = vld [vmem:[%s3] sm:$0x1]
      %v59 = vld [vmem:[#allocation11] sm:$0xff]
      %v60 = vld [vmem:[#allocation11 + $0x8] sm:$0xff]
      %v61 = vld [vmem:[#allocation11 + $0x10] sm:$0xff]
      %v62 = vld [vmem:[#allocation11 + $0x18] sm:$0xff]
      %v64 = vlaneseq
      %v65 = vshrl.u32 %v64, 7
      %v66 = vsub.s32 0, %v65
      %v67 = vrot.slane %v58, %v66
      %vm69 = vcmask 261120
      %v71 = vsel %vm69, %v57, 0
      %73 = vmatprep.subr.mxu0 0.0
      %74 = vmatpush1.msra.mxu0 %v59
      %75 = vmatprep.subr.mxu0 0.0
      %76 = vmatpush1.msra.mxu0 %v60
      %77 = vmatprep.subr.mxu0 0.0
      %78 = vmatpush1.msra.mxu0 %v61
      %79 = vmatprep.subr.mxu0 0.0
      %80 = vmatpush1.msra.mxu0 %v62
      %81 = vmatprep.subr.mxu0 0.0
      %82 = vmatpush1.msra.mxu0 0.0
      %83 = vmatprep.subr.mxu0 0.0
      %84 = vmatpush1.msra.mxu0 0.0
      %85 = vmatprep.subr.mxu0 0.0
      %86 = vmatpush1.msra.mxu0 0.0
      %87 = vmatprep.subr.mxu0 0.0
      %88 = vmatpush1.msra.mxu0 0.0
      %89 = vmatprep.subr.mxu0 0.0
      %90 = vmatpush1.msra.mxu0 0.0
      %91 = vmatprep.subr.mxu0 0.0
      %92 = vmatpush1.msra.mxu0 0.0
      %93 = vmatprep.subr.mxu0 0.0
      %94 = vmatpush1.msra.mxu0 0.0
      %95 = vmatprep.subr.mxu0 0.0
      %96 = vmatpush1.msra.mxu0 0.0
      %97 = vmatprep.subr.mxu0 0.0
      %98 = vmatpush1.msra.mxu0 0.0
      %99 = vmatprep.subr.mxu0 0.0
      %100 = vmatpush1.msra.mxu0 0.0
      %101 = vmatprep.subr.mxu0 0.0
      %102 = vmatpush1.msra.mxu0 0.0
      %103 = vmatprep.subr.mxu0 0.0
      %104 = vmatpush1.msra.mxu0 0.0
      %105 = vmatprep.subr.mxu0 0.0
      %106 = vmatpush1.msra.mxu0 0.0
      %107 = vmatprep.subr.mxu0 0.0
      %108 = vmatpush1.msra.mxu0 0.0
      %109 = vmatprep.subr.mxu0 0.0
      %110 = vmatpush1.msra.mxu0 0.0
      %111 = vmatprep.subr.mxu0 0.0
      %112 = vmatpush1.msra.mxu0 0.0
      %113 = vmatprep.subr.mxu0 0.0
      %114 = vmatpush1.msra.mxu0 0.0
      %115 = vmatprep.subr.mxu0 0.0
      %116 = vmatpush1.msra.mxu0 0.0
      %117 = vmatprep.subr.mxu0 0.0
      %118 = vmatpush1.msra.mxu0 0.0
      %119 = vmatprep.subr.mxu0 0.0
      %120 = vmatpush1.msra.mxu0 0.0
      %121 = vmatprep.subr.mxu0 0.0
      %122 = vmatpush1.msra.mxu0 0.0
      %123 = vmatprep.subr.mxu0 0.0
      %124 = vmatpush1.msra.mxu0 0.0
      %125 = vmatprep.subr.mxu0 0.0
      %126 = vmatpush1.msra.mxu0 0.0
      %127 = vmatprep.subr.mxu0 0.0
      %128 = vmatpush1.msra.mxu0 0.0
      %129 = vmatprep.subr.mxu0 0.0
      %130 = vmatpush1.msra.mxu0 0.0
      %131 = vmatprep.subr.mxu0 0.0
      %132 = vmatpush1.msra.mxu0 0.0
      %133 = vmatprep.subr.mxu0 0.0
      %134 = vmatpush1.msra.mxu0 0.0
      %135 = vmatprep.subr.mxu0 0.0
      %136 = vmatpush1.msra.mxu0 0.0
      %137 = vmatprep.mubr.f32.mxu0 0.0
      %138 = vmatmul.mubr.f32.gmra.mrb[0].mxu0 %v71
      %v139 = vpop.f32.mrb[0].mxu0
      %v140 = vadd.f32 %v67, %v139
      %v141 = vpop.f32.mrb[0].mxu0
      %142 = vdwg.mxu0
      %vm143 = vcmask 254976
      %144 = vst.msk [vmem:[#allocation2] sm:$0x3] %vm143, %v140
      %v145 = vmul.f32 %v57, %v67
      %v146 = vsel %vm143, %v145, 0.0
      %147 = vadd.xlane.f32.xlu0 %v146
      %v148 = vpop.xlane.xlu0 %147
      %s149 = sld [smem:[#allocation7]]
      %v150 = vstv %s149
      %v151 = vadd.f32 %v148, %v150
      %vm152 = vcmask 1024
      %153 = vst.msk [vmem:[#allocation3] sm:$0x3] %vm152, %v151
      %154 = vst.msk [vmem:[#allocation4] sm:$0x3] %vm152, -inf
      %155 = vst.msk [vmem:[#allocation5] sm:$0x3] %vm152, 0.0
      %156 = vst.msk [vmem:[#allocation6] sm:$0x3] %vm143, 0.0
    $region33: #{tpu_custom_call.1} parent=1 // pred_fallthru
      _
    %v157 = vld [vmem:[#allocation8] sm:$0xff]
    %v158 = vld [vmem:[#allocation8 + $0x8] sm:$0xff]
    %v159 = vld [vmem:[#allocation2] sm:$0x3]
    %v160 = vlaneseq
    %v161 = vshrl.u32 %v160, 7
    %v162 = vsub.s32 0, %v161
    %v163 = vrot.slane %v159, %v162
    %165 = vbcast.lane.b32.xlu0 %v163, 256
    %v166 = vpop.permute.xlu0 %165
    %s168 = sor.u32 256, 8
    %169 = vbcast.lane.b32.xlu0 %v163, %s168
    %v170 = vpop.permute.xlu0 %169
    %s172 = sor.u32 256, 16
    %173 = vbcast.lane.b32.xlu0 %v163, %s172
    %v174 = vpop.permute.xlu0 %173
    %s176 = sor.u32 256, 24
    %177 = vbcast.lane.b32.xlu0 %v163, %s176
    %v178 = vpop.permute.xlu0 %177
    %v179 = vlaneseq
    %v180 = vshrl.u32 %v179, 7
    %v181 = vsub.s32 1, %v180
    %v182 = vrot.slane %v159, %v181
    %184 = vbcast.lane.b32.xlu0 %v182, 256
    %v185 = vpop.permute.xlu0 %184
    %s187 = sor.u32 256, 8
    %188 = vbcast.lane.b32.xlu0 %v182, %s187
    %v189 = vpop.permute.xlu0 %188
    %s191 = sor.u32 256, 16
    %192 = vbcast.lane.b32.xlu0 %v182, %s191
    %v193 = vpop.permute.xlu0 %192
    %s195 = sor.u32 256, 24
    %196 = vbcast.lane.b32.xlu0 %v182, %s195
    %v197 = vpop.permute.xlu0 %196
    %vm198 = vcmask 261120
    %v200 = vsel %vm198, %v157, 0
    %202 = vmatprep.subr.mxu0 0.0
    %203 = vmatpush1.msra.mxu0 %v166
    %204 = vmatprep.subr.mxu0 0.0
    %205 = vmatpush1.msra.mxu0 %v170
    %206 = vmatprep.subr.mxu0 0.0
    %207 = vmatpush1.msra.mxu0 %v174
    %208 = vmatprep.subr.mxu0 0.0
    %209 = vmatpush1.msra.mxu0 %v178
    %210 = vmatprep.subr.mxu0 0.0
    %211 = vmatpush1.msra.mxu0 0.0
    %212 = vmatprep.subr.mxu0 0.0
    %213 = vmatpush1.msra.mxu0 0.0
    %214 = vmatprep.subr.mxu0 0.0
    %215 = vmatpush1.msra.mxu0 0.0
    %216 = vmatprep.subr.mxu0 0.0
    %217 = vmatpush1.msra.mxu0 0.0
    %218 = vmatprep.subr.mxu0 0.0
    %219 = vmatpush1.msra.mxu0 0.0
    %220 = vmatprep.subr.mxu0 0.0
    %221 = vmatpush1.msra.mxu0 0.0
    %222 = vmatprep.subr.mxu0 0.0
    %223 = vmatpush1.msra.mxu0 0.0
    %224 = vmatprep.subr.mxu0 0.0
    %225 = vmatpush1.msra.mxu0 0.0
    %226 = vmatprep.subr.mxu0 0.0
    %227 = vmatpush1.msra.mxu0 0.0
    %228 = vmatprep.subr.mxu0 0.0
    %229 = vmatpush1.msra.mxu0 0.0
    %230 = vmatprep.subr.mxu0 0.0
    %231 = vmatpush1.msra.mxu0 0.0
    %232 = vmatprep.subr.mxu0 0.0
    %233 = vmatpush1.msra.mxu0 0.0
    %234 = vmatprep.subr.mxu0 0.0
    %235 = vmatpush1.msra.mxu0 0.0
    %236 = vmatprep.subr.mxu0 0.0
    %237 = vmatpush1.msra.mxu0 0.0
    %238 = vmatprep.subr.mxu0 0.0
    %239 = vmatpush1.msra.mxu0 0.0
    %240 = vmatprep.subr.mxu0 0.0
    %241 = vmatpush1.msra.mxu0 0.0
    %242 = vmatprep.subr.mxu0 0.0
    %243 = vmatpush1.msra.mxu0 0.0
    %244 = vmatprep.subr.mxu0 0.0
    %245 = vmatpush1.msra.mxu0 0.0
    %246 = vmatprep.subr.mxu0 0.0
    %247 = vmatpush1.msra.mxu0 0.0
    %248 = vmatprep.subr.mxu0 0.0
    %249 = vmatpush1.msra.mxu0 0.0
    %250 = vmatprep.subr.mxu0 0.0
    %251 = vmatpush1.msra.mxu0 0.0
    %252 = vmatprep.subr.mxu0 0.0
    %253 = vmatpush1.msra.mxu0 0.0
    %254 = vmatprep.subr.mxu0 0.0
    %255 = vmatpush1.msra.mxu0 0.0
    %256 = vmatprep.subr.mxu0 0.0
    %257 = vmatpush1.msra.mxu0 0.0
    %258 = vmatprep.subr.mxu0 0.0
    %259 = vmatpush1.msra.mxu0 0.0
    %260 = vmatprep.subr.mxu0 0.0
    %261 = vmatpush1.msra.mxu0 0.0
    %262 = vmatprep.subr.mxu0 0.0
    %263 = vmatpush1.msra.mxu0 0.0
    %264 = vmatprep.subr.mxu0 0.0
    %265 = vmatpush1.msra.mxu0 0.0
    %266 = vmatprep.mubr.f32.mxu0 0.0
    %267 = vmatmul.mubr.f32.gmra.mrb[0].mxu0 %v200
    %v268 = vpop.f32.mrb[0].mxu0
    %v269 = vadd.f32 0.0, %v268
    %v270 = vpop.f32.mrb[0].mxu0
    %271 = vdwg.mxu0
    %v273 = vsel %vm198, %v158, 0
    %275 = vmatprep.subr.mxu0 0.0
    %276 = vmatpush1.msra.mxu0 %v185
    %277 = vmatprep.subr.mxu0 0.0
    %278 = vmatpush1.msra.mxu0 %v189
    %279 = vmatprep.subr.mxu0 0.0
    %280 = vmatpush1.msra.mxu0 %v193
    %281 = vmatprep.subr.mxu0 0.0
    %282 = vmatpush1.msra.mxu0 %v197
    %283 = vmatprep.subr.mxu0 0.0
    %284 = vmatpush1.msra.mxu0 0.0
    %285 = vmatprep.subr.mxu0 0.0
    %286 = vmatpush1.msra.mxu0 0.0
    %287 = vmatprep.subr.mxu0 0.0
    %288 = vmatpush1.msra.mxu0 0.0
    %289 = vmatprep.subr.mxu0 0.0
    %290 = vmatpush1.msra.mxu0 0.0
    %291 = vmatprep.subr.mxu0 0.0
    %292 = vmatpush1.msra.mxu0 0.0
    %293 = vmatprep.subr.mxu0 0.0
    %294 = vmatpush1.msra.mxu0 0.0
    %295 = vmatprep.subr.mxu0 0.0
    %296 = vmatpush1.msra.mxu0 0.0
    %297 = vmatprep.subr.mxu0 0.0
    %298 = vmatpush1.msra.mxu0 0.0
    %299 = vmatprep.subr.mxu0 0.0
    %300 = vmatpush1.msra.mxu0 0.0
    %301 = vmatprep.subr.mxu0 0.0
    %302 = vmatpush1.msra.mxu0 0.0
    %303 = vmatprep.subr.mxu0 0.0
    %304 = vmatpush1.msra.mxu0 0.0
    %305 = vmatprep.subr.mxu0 0.0
    %306 = vmatpush1.msra.mxu0 0.0
    %307 = vmatprep.subr.mxu0 0.0
    %308 = vmatpush1.msra.mxu0 0.0
    %309 = vmatprep.subr.mxu0 0.0
    %310 = vmatpush1.msra.mxu0 0.0
    %311 = vmatprep.subr.mxu0 0.0
    %312 = vmatpush1.msra.mxu0 0.0
    %313 = vmatprep.subr.mxu0 0.0
    %314 = vmatpush1.msra.mxu0 0.0
    %315 = vmatprep.subr.mxu0 0.0
    %316 = vmatpush1.msra.mxu0 0.0
    %317 = vmatprep.subr.mxu0 0.0
    %318 = vmatpush1.msra.mxu0 0.0
    %319 = vmatprep.subr.mxu0 0.0
    %320 = vmatpush1.msra.mxu0 0.0
    %321 = vmatprep.subr.mxu0 0.0
    %322 = vmatpush1.msra.mxu0 0.0
    %323 = vmatprep.subr.mxu0 0.0
    %324 = vmatpush1.msra.mxu0 0.0
    %325 = vmatprep.subr.mxu0 0.0
    %326 = vmatpush1.msra.mxu0 0.0
    %327 = vmatprep.subr.mxu0 0.0
    %328 = vmatpush1.msra.mxu0 0.0
    %329 = vmatprep.subr.mxu0 0.0
    %330 = vmatpush1.msra.mxu0 0.0
    %331 = vmatprep.subr.mxu0 0.0
    %332 = vmatpush1.msra.mxu0 0.0
    %333 = vmatprep.subr.mxu0 0.0
    %334 = vmatpush1.msra.mxu0 0.0
    %335 = vmatprep.subr.mxu0 0.0
    %336 = vmatpush1.msra.mxu0 0.0
    %337 = vmatprep.subr.mxu0 0.0
    %338 = vmatpush1.msra.mxu0 0.0
    %339 = vmatprep.mubr.f32.mxu0 0.0
    %340 = vmatmul.mubr.f32.gmra.mrb[0].mxu0 %v273
    %v341 = vpop.f32.mrb[0].mxu0
    %v342 = vadd.f32 0.0, %v341
    %v343 = vpop.f32.mrb[0].mxu0
    %344 = vdwg.mxu0
    %v345 = vld [vmem:[#allocation3] sm:$0x3]
    %347 = vset.pattern.permute.xlu0 0
    %348 = vperm.xlu0 %347, %v345
    %v349 = vpop.permute.xlu0 %348
    %v350 = vlaneseq
    %v351 = vshrl.u32 %v350, 7
    %v352 = vsub.s32 0, %v351
    %v353 = vrot.slane %v349, %v352
    %v354 = vlaneseq
    %v355 = vshrl.u32 %v354, 7
    %v356 = vsub.s32 1, %v355
    %v357 = vrot.slane %v349, %v356
    %v360 = vadd.f32 %v269, %v353
    %v361 = vadd.f32 %v342, %v357
    %364 = vset.pattern.permute.xlu0 0
    %365 = vperm.xlu0 %364, %v360
    %v366 = vpop.permute.xlu0 %365
    %367 = vset.pattern.permute.xlu0 0
    %368 = vperm.xlu0 %367, %v361
    %v369 = vpop.permute.xlu0 %368
    %v370 = vlaneseq
    %v371 = vand.u32 %v370, 127
    %v372 = vlaneseq
    %v373 = vshrl.u32 %v372, 7
    %v374 = vsub.s32 %v371, %v373
    %v375 = vrot.slane %v366, %v374
    %v376 = vlaneseq
    %v377 = vshrl.u32 %v376, 7
    %v378 = vsub.s32 %v371, %v377
    %v379 = vrot.slane %v369, %v378
    %vm380 = vcmask 1041409
    %v381 = vsel %vm380, %v379, %v375
    %vm383 = vcmask 58368
    %384 = vst.msk [vmem:[#allocation13] sm:$0x3] %vm383, %v381
    %v385 = vld [vmem:[#allocation4] sm:$0x3]
    %v386 = vsel %vm383, %v381, -inf
    %387 = vmax.xlane.f32.xlu0 %v386
    %v388 = vpop.xlane.xlu0 %387
    %v389 = vmax.f32 %v385, %v388
    %v390 = vsub.f32 %v385, %v389
    %v391 = vmul.f32 %v390, 1.442695
    %v392 = vpow.pop %v391
    %394 = vset.pattern.permute.xlu0 0
    %395 = vperm.xlu0 %394, %v389
    %v396 = vpop.permute.xlu0 %395
    %v397 = vlaneseq
    %v398 = vshrl.u32 %v397, 7
    %v399 = vsub.s32 0, %v398
    %v400 = vrot.slane %v396, %v399
    %v401 = vlaneseq
    %v402 = vshrl.u32 %v401, 7
    %v403 = vsub.s32 1, %v402
    %v404 = vrot.slane %v396, %v403
    %v407 = vsub.f32 %v360, %v400
    %v408 = vsub.f32 %v361, %v404
    %v409 = vmul.f32 %v407, 1.442695
    %v410 = vpow.pop %v409
    %v411 = vmul.f32 %v408, 1.442695
    %v412 = vpow.pop %v411
    %v413 = vld [vmem:[#allocation5] sm:$0x3]
    %v414 = vmul.f32 %v392, %v413
    %417 = vset.pattern.permute.xlu0 0
    %418 = vperm.xlu0 %417, %v410
    %v419 = vpop.permute.xlu0 %418
    %420 = vset.pattern.permute.xlu0 0
    %421 = vperm.xlu0 %420, %v412
    %v422 = vpop.permute.xlu0 %421
    %v423 = vlaneseq
    %v424 = vshrl.u32 %v423, 7
    %v425 = vsub.s32 %v371, %v424
    %v426 = vrot.slane %v419, %v425
    %v427 = vlaneseq
    %v428 = vshrl.u32 %v427, 7
    %v429 = vsub.s32 %v371, %v428
    %v430 = vrot.slane %v422, %v429
    %v431 = vsel %vm380, %v430, %v426
    %v433 = vsel %vm383, %v431, 0.0
    %434 = vadd.xlane.f32.xlu0 %v433
    %v435 = vpop.xlane.xlu0 %434
    %v436 = vadd.f32 %v414, %v435
    %vm437 = vcmask 1024
    %438 = vst.msk [vmem:[#allocation5] sm:$0x3] %vm437, %v436
    %vm439 = vcmask 64512
    %v440 = vsel %vm439, %v426, 0
    %442 = vmatprep.subr.mxu0 0.0
    %443 = vmatpush1.msra.mxu0 %v157
    %444 = vmatprep.subr.mxu0 0.0
    %445 = vmatpush1.msra.mxu0 0.0
    %446 = vmatprep.subr.mxu0 0.0
    %447 = vmatpush1.msra.mxu0 0.0
    %448 = vmatprep.subr.mxu0 0.0
    %449 = vmatpush1.msra.mxu0 0.0
    %450 = vmatprep.subr.mxu0 0.0
    %451 = vmatpush1.msra.mxu0 0.0
    %452 = vmatprep.subr.mxu0 0.0
    %453 = vmatpush1.msra.mxu0 0.0
    %454 = vmatprep.subr.mxu0 0.0
    %455 = vmatpush1.msra.mxu0 0.0
    %456 = vmatprep.subr.mxu0 0.0
    %457 = vmatpush1.msra.mxu0 0.0
    %458 = vmatprep.subr.mxu0 0.0
    %459 = vmatpush1.msra.mxu0 0.0
    %460 = vmatprep.subr.mxu0 0.0
    %461 = vmatpush1.msra.mxu0 0.0
    %462 = vmatprep.subr.mxu0 0.0
    %463 = vmatpush1.msra.mxu0 0.0
    %464 = vmatprep.subr.mxu0 0.0
    %465 = vmatpush1.msra.mxu0 0.0
    %466 = vmatprep.subr.mxu0 0.0
    %467 = vmatpush1.msra.mxu0 0.0
    %468 = vmatprep.subr.mxu0 0.0
    %469 = vmatpush1.msra.mxu0 0.0
    %470 = vmatprep.subr.mxu0 0.0
    %471 = vmatpush1.msra.mxu0 0.0
    %472 = vmatprep.subr.mxu0 0.0
    %473 = vmatpush1.msra.mxu0 0.0
    %474 = vmatprep.subr.mxu0 0.0
    %475 = vmatpush1.msra.mxu0 0.0
    %476 = vmatprep.subr.mxu0 0.0
    %477 = vmatpush1.msra.mxu0 0.0
    %478 = vmatprep.subr.mxu0 0.0
    %479 = vmatpush1.msra.mxu0 0.0
    %480 = vmatprep.subr.mxu0 0.0
    %481 = vmatpush1.msra.mxu0 0.0
    %482 = vmatprep.subr.mxu0 0.0
    %483 = vmatpush1.msra.mxu0 0.0
    %484 = vmatprep.subr.mxu0 0.0
    %485 = vmatpush1.msra.mxu0 0.0
    %486 = vmatprep.subr.mxu0 0.0
    %487 = vmatpush1.msra.mxu0 0.0
    %488 = vmatprep.subr.mxu0 0.0
    %489 = vmatpush1.msra.mxu0 0.0
    %490 = vmatprep.subr.mxu0 0.0
    %491 = vmatpush1.msra.mxu0 0.0
    %492 = vmatprep.subr.mxu0 0.0
    %493 = vmatpush1.msra.mxu0 0.0
    %494 = vmatprep.subr.mxu0 0.0
    %495 = vmatpush1.msra.mxu0 0.0
    %496 = vmatprep.subr.mxu0 0.0
    %497 = vmatpush1.msra.mxu0 0.0
    %498 = vmatprep.subr.mxu0 0.0
    %499 = vmatpush1.msra.mxu0 0.0
    %500 = vmatprep.subr.mxu0 0.0
    %501 = vmatpush1.msra.mxu0 0.0
    %502 = vmatprep.subr.mxu0 0.0
    %503 = vmatpush1.msra.mxu0 0.0
    %504 = vmatprep.subr.mxu0 0.0
    %505 = vmatpush1.msra.mxu0 0.0
    %506 = vmatprep.mubr.f32.mxu0 0.0
    %507 = vmatmul.mubr.f32.gmra.mrb[0].mxu0 %v440
    %v508 = vpop.f32.mrb[0].mxu0
    %v509 = vadd.f32 0.0, %v508
    %v510 = vpop.f32.mrb[0].mxu0
    %511 = vdwg.mxu0
    %v512 = vsel %vm439, %v430, 0
    %514 = vmatprep.subr.mxu0 0.0
    %515 = vmatpush1.msra.mxu0 %v158
    %516 = vmatprep.subr.mxu0 0.0
    %517 = vmatpush1.msra.mxu0 0.0
    %518 = vmatprep.subr.mxu0 0.0
    %519 = vmatpush1.msra.mxu0 0.0
    %520 = vmatprep.subr.mxu0 0.0
    %521 = vmatpush1.msra.mxu0 0.0
    %522 = vmatprep.subr.mxu0 0.0
    %523 = vmatpush1.msra.mxu0 0.0
    %524 = vmatprep.subr.mxu0 0.0
    %525 = vmatpush1.msra.mxu0 0.0
    %526 = vmatprep.subr.mxu0 0.0
    %527 = vmatpush1.msra.mxu0 0.0
    %528 = vmatprep.subr.mxu0 0.0
    %529 = vmatpush1.msra.mxu0 0.0
    %530 = vmatprep.subr.mxu0 0.0
    %531 = vmatpush1.msra.mxu0 0.0
    %532 = vmatprep.subr.mxu0 0.0
    %533 = vmatpush1.msra.mxu0 0.0
    %534 = vmatprep.subr.mxu0 0.0
    %535 = vmatpush1.msra.mxu0 0.0
    %536 = vmatprep.subr.mxu0 0.0
    %537 = vmatpush1.msra.mxu0 0.0
    %538 = vmatprep.subr.mxu0 0.0
    %539 = vmatpush1.msra.mxu0 0.0
    %540 = vmatprep.subr.mxu0 0.0
    %541 = vmatpush1.msra.mxu0 0.0
    %542 = vmatprep.subr.mxu0 0.0
    %543 = vmatpush1.msra.mxu0 0.0
    %544 = vmatprep.subr.mxu0 0.0
    %545 = vmatpush1.msra.mxu0 0.0
    %546 = vmatprep.subr.mxu0 0.0
    %547 = vmatpush1.msra.mxu0 0.0
    %548 = vmatprep.subr.mxu0 0.0
    %549 = vmatpush1.msra.mxu0 0.0
    %550 = vmatprep.subr.mxu0 0.0
    %551 = vmatpush1.msra.mxu0 0.0
    %552 = vmatprep.subr.mxu0 0.0
    %553 = vmatpush1.msra.mxu0 0.0
    %554 = vmatprep.subr.mxu0 0.0
    %555 = vmatpush1.msra.mxu0 0.0
    %556 = vmatprep.subr.mxu0 0.0
    %557 = vmatpush1.msra.mxu0 0.0
    %558 = vmatprep.subr.mxu0 0.0
    %559 = vmatpush1.msra.mxu0 0.0
    %560 = vmatprep.subr.mxu0 0.0
    %561 = vmatpush1.msra.mxu0 0.0
    %562 = vmatprep.subr.mxu0 0.0
    %563 = vmatpush1.msra.mxu0 0.0
    %564 = vmatprep.subr.mxu0 0.0
    %565 = vmatpush1.msra.mxu0 0.0
    %566 = vmatprep.subr.mxu0 0.0
    %567 = vmatpush1.msra.mxu0 0.0
    %568 = vmatprep.subr.mxu0 0.0
    %569 = vmatpush1.msra.mxu0 0.0
    %570 = vmatprep.subr.mxu0 0.0
    %571 = vmatpush1.msra.mxu0 0.0
    %572 = vmatprep.subr.mxu0 0.0
    %573 = vmatpush1.msra.mxu0 0.0
    %574 = vmatprep.subr.mxu0 0.0
    %575 = vmatpush1.msra.mxu0 0.0
    %576 = vmatprep.subr.mxu0 0.0
    %577 = vmatpush1.msra.mxu0 0.0
    %578 = vmatprep.mubr.f32.mxu0 0.0
    %579 = vmatmul.mubr.f32.gmra.mrb[0].mxu0 %v512
    %v580 = vpop.f32.mrb[0].mxu0
    %v581 = vadd.f32 0.0, %v580
    %v582 = vpop.f32.mrb[0].mxu0
    %583 = vdwg.mxu0
    %v584 = vld [vmem:[#allocation6] sm:$0x3]
    %586 = vset.pattern.permute.xlu0 0
    %587 = vperm.xlu0 %586, %v392
    %v588 = vpop.permute.xlu0 %587
    %v590 = vmul.f32 %v588, %v584
    %v593 = vrot.slane %v581, 7
    %v594 = vsel %vm380, %v593, %v509
    %v596 = vadd.f32 %v590, %v594
    %vm597 = vcmask 254976
    %598 = vst.msk [vmem:[#allocation6] sm:$0x3] %vm597, %v596
    %599 = vst.msk [vmem:[#allocation4] sm:$0x3] %vm437, %v389
    // Predicated region
    $region34: #{tpu_custom_call.1} parent=1 // pred_check
      %p600 = pneg %p53
    $region35: #{tpu_custom_call.1} parent=1 // pred_check_branch
      %602 = sbr.rel (%p600) target = $region37
    $region36: #{tpu_custom_call.1} parent=1 // pred_region
      %v603 = vld [vmem:[#allocation5] sm:$0x3]
      %v604 = vrcp.pop %v603
      %v605 = vmul.f32 %v603, %v604
      %v606 = vsub.f32 2.0, %v605
      %v607 = vmul.f32 %v604, %v606
      %v608 = vld [vmem:[#allocation6] sm:$0x3]
      %610 = vset.pattern.permute.xlu0 0
      %611 = vperm.xlu0 %610, %v607
      %v612 = vpop.permute.xlu0 %611
      %v614 = vmul.f32 %v608, %v612
      %615 = vst.msk [vmem:[#allocation14] sm:$0x3] %vm597, %v614
    $region37: #{tpu_custom_call.1} parent=1 // pred_fallthru
      _
    // Predicated region
    $region38: #{tpu_custom_call.1} parent=1 // pred_check
      _
    $region39: #{tpu_custom_call.1} parent=1 // pred_check_branch
      %617 = sbr.rel (0) target = $region41
    $region40: #{tpu_custom_call.1} parent=1 // pred_region
      %s619 = ssub.s32 32, 32
      %620 = vsyncadd [#allocation10], %s619
      %s622 = sshll.u32 [#allocation13], 4
      %s623 = int_to_ptr.vmem [resolvable:$true] %s622
      %625 = dma.vmem_to_hbm [thread:$0]  %s623, 32, %s5, [#allocation10]
    $region41: #{tpu_custom_call.1} parent=1 // pred_fallthru
      _
    // Predicated region
    $region42: #{tpu_custom_call.1} parent=1 // pred_check
      _
    $region43: #{tpu_custom_call.1} parent=1 // pred_check_branch
      %627 = sbr.rel (0) target = $region45
    $region44: #{tpu_custom_call.1} parent=1 // pred_region
      %s629 = ssub.s32 32, 32
      %630 = vsyncadd [#allocation15], %s629
      %s632 = sshll.u32 [#allocation14], 4
      %s633 = int_to_ptr.vmem [resolvable:$true] %s632
      %635 = dma.vmem_to_hbm [thread:$0]  %s633, 32, %s6, [#allocation15]
    $region45: #{tpu_custom_call.1} parent=1 // pred_fallthru
      _
    // Predicated region
    $region46: #{tpu_custom_call.1} parent=1 // pred_check
      _
    $region47: #{tpu_custom_call.1} parent=1 // pred_check_branch
      %637 = sbr.rel (0) target = $region49
    $region48: #{tpu_custom_call.1} parent=1 // pred_region
      %638 = dma.done [#allocation10], 32
    $region49: #{tpu_custom_call.1} parent=1 // pred_fallthru
      _
    // Predicated region
    $region50: #{tpu_custom_call.1} parent=1 // pred_check
      _
    $region51: #{tpu_custom_call.1} parent=1 // pred_check_branch
      %640 = sbr.rel (0) target = $region53
    $region52: #{tpu_custom_call.1} parent=1 // pred_region
      %641 = dma.done [#allocation15], 32
    $region53: #{tpu_custom_call.1} parent=1 // pred_fallthru
      _
    %642 = vsyncpa [#allocation9], 1
    %643 = vsyncpa [#allocation12], 1
    %644 = vsyncpa [#allocation10], 1
    %645 = vsyncpa [#allocation15], 1

</llo_original>
